<compile_context>
chip_gen: v7x
topology: tpu7x:2x2x1
jax: 0.10.0
libtpu: 0.0.40
codegen_flags: <defaults>
</compile_context>

<pallas_src>
import functools

import jax
import jax.numpy as jnp
from jax import lax
from jax.experimental import pallas as pl
from jax.experimental.pallas import tpu as pltpu


_MASK_VALUE = -1e30  # large finite negative: avoids (-inf)-(-inf)=nan corners


def _layernorm(h, gamma, beta, eps=1e-5):
    mu = jnp.mean(h, axis=-1, keepdims=True)
    var = jnp.mean((h - mu) ** 2, axis=-1, keepdims=True)
    return (h - mu) * lax.rsqrt(var + eps) * gamma + beta


def _nbytes(shape, dtype):
    n = 1
    for d in shape:
        n *= int(d)
    return n * jnp.dtype(dtype).itemsize


def _vmem_cap_bytes():
    """Physical VMEM of this generation (fallback 128 MiB), with 25% headroom."""
    try:
        cap = int(pltpu.get_tpu_info().vmem_capacity_bytes)
    except Exception:
        cap = 128 * 1024 * 1024
    return (cap * 3) // 4


def _compiler_params(semantics, pipelined, resident):
    """VMEM limit from actual tile sizes.

    pipelined: [(shape, dtype)] blocks double-buffered by the pipeline
               (includes constant-index weight blocks -- those are still
               double-buffered by default).
    resident : [(shape, dtype)] in-kernel temporaries / scratch held once.
    """
    est = (2 * sum(_nbytes(s, d) for s, d in pipelined)
           + sum(_nbytes(s, d) for s, d in resident))
    limit = int(min(_vmem_cap_bytes(), max(16 * 1024 * 1024, 2 * est)))
    return pltpu.CompilerParams(dimension_semantics=semantics,
                                vmem_limit_bytes=limit)


# --------------------------------------------------------------------------
# Kernel 1: LN1 + K/Q/V projection (q pre-scaled), tiled over (batch, seq)
# --------------------------------------------------------------------------
def _qkv_kernel(x_ref, g1_ref, b1_ref, wk_ref, wq_ref, wv_ref,
                k_ref, q_ref, v_ref, *, scale):
    x = x_ref[...].astype(jnp.float32)                                # (TS, C)
    h = _layernorm(x, g1_ref[0], b1_ref[0]).astype(jnp.bfloat16)      # bf16 MXU operand
    k_ref[...] = jnp.dot(h, wk_ref[...],
                         preferred_element_type=jnp.float32).astype(k_ref.dtype)
    q = jnp.dot(h, wq_ref[...], preferred_element_type=jnp.float32) * scale
    q_ref[...] = q.astype(q_ref.dtype)
    v_ref[...] = jnp.dot(h, wv_ref[...],
                         preferred_element_type=jnp.float32).astype(v_ref.dtype)


# --------------------------------------------------------------------------
# Kernel 2: causal flash attention, grid (batch, q_tile)
#   * q/k/v/o all in (B, T, C) layout (no head-major transposes anywhere)
#   * heads: static python loop over column slices of the (.., C) tiles
#   * KV: in-kernel fori_loop, trip count = #strictly-below-diagonal tiles
#   * masking only on the diagonal tile, with a static mask
# --------------------------------------------------------------------------
def _attn_kernel(q_ref, k_ref, v_ref, o_ref, *, block_q, n_head, hd):
    qi = pl.program_id(1)
    diag_start = pl.multiple_of(qi * block_q, block_q)

    # Static lower-triangular mask for the diagonal tile (block_kv == block_q).
    ri = lax.broadcasted_iota(jnp.int32, (block_q, block_q), 0)
    ci = lax.broadcasted_iota(jnp.int32, (block_q, block_q), 1)
    causal = ci <= ri

    outs = []
    for h in range(n_head):
        col = h * hd
        q_h = q_ref[:, pl.ds(col, hd)]                     # (block_q, hd) bf16, pre-scaled

        # ---- diagonal tile (ki == qi): the only tile that needs masking ----
        k_d = k_ref[pl.ds(diag_start, block_q), pl.ds(col, hd)]
        v_d = v_ref[pl.ds(diag_start, block_q), pl.ds(col, hd)]
        s = lax.dot_general(q_h, k_d, (((1,), (1,)), ((), ())),
                            preferred_element_type=jnp.float32)       # (bq, bq) f32
        s = jnp.where(causal, s, _MASK_VALUE)
        m = jnp.max(s, axis=-1, keepdims=True)
        p = jnp.exp(s - m)
        l = jnp.sum(p, axis=-1, keepdims=True)
        acc = jnp.dot(p.astype(v_d.dtype), v_d, preferred_element_type=jnp.float32)

        # ---- strictly-below-diagonal tiles: no masking, dynamic trip count qi ----
        def body(ki, carry, _col=col, _q_h=q_h):
            m, l, acc = carry
            start = pl.multiple_of(ki * block_q, block_q)
            k_t = k_ref[pl.ds(start, block_q), pl.ds(_col, hd)]
            v_t = v_ref[pl.ds(start, block_q), pl.ds(_col, hd)]
            s = lax.dot_general(_q_h, k_t, (((1,), (1,)), ((), ())),
                                preferred_element_type=jnp.float32)
            m_new = jnp.maximum(m, jnp.max(s, axis=-1, keepdims=True))
            alpha = jnp.exp(m - m_new)
            p = jnp.exp(s - m_new)
            l_new = alpha * l + jnp.sum(p, axis=-1, keepdims=True)
            acc_new = alpha * acc + jnp.dot(p.astype(v_t.dtype), v_t,
                                            preferred_element_type=jnp.float32)
            return m_new, l_new, acc_new

        m, l, acc = lax.fori_loop(0, qi, body, (m, l, acc))
        outs.append(acc * pl.reciprocal(l, approx=True))

    # Single lane-dense store, directly in (B, T, C) layout.
    o_ref[...] = jnp.concatenate(outs, axis=-1).astype(o_ref.dtype)


# --------------------------------------------------------------------------
# Kernel 3: output projection + residual + LN2 + FFN + residual
# --------------------------------------------------------------------------
def _proj_ffn_kernel(x_ref, att_ref, wproj_ref, g2_ref, b2_ref,
                     wfc1_ref, bfc1_ref, wfc2_ref, bfc2_ref, o_ref):
    x = x_ref[...].astype(jnp.float32)                                 # (TS, C)
    sa = jnp.dot(att_ref[...], wproj_ref[...],
                 preferred_element_type=jnp.float32)                   # bf16 x bf16 -> f32
    x = x + sa                                                         # residual 1
    h = _layernorm(x, g2_ref[0], b2_ref[0]).astype(jnp.bfloat16)
    h = jnp.dot(h, wfc1_ref[...], preferred_element_type=jnp.float32) + bfc1_ref[0]
    h = jnp.maximum(h, 0.0).astype(jnp.bfloat16)                       # ReLU
    h = jnp.dot(h, wfc2_ref[...], preferred_element_type=jnp.float32) + bfc2_ref[0]
    o_ref[...] = (x + h).astype(o_ref.dtype)                           # residual 2


# --------------------------------------------------------------------------
# Wrapper
# --------------------------------------------------------------------------
def transformer_block(x, params, n_head, *, block_q=256, block_s=256):
    """x: (B, T, C).

    block_q / block_s: 256 is a safe default; 512 amortizes per-step overhead
    better on v6e (128 MiB VMEM), 128-256 on v5e. Clamped to T.
    """
    (ln1g, ln1b, w_attn, w_proj, ln2g, ln2b, w_fc1, b_fc1, w_fc2, b_fc2) = params
    B, T, C = x.shape
    assert C % n_head == 0
    hd = C // n_head

    block_q = min(block_q, T)
    block_s = min(block_s, T)
    assert T % block_q == 0 and T % block_s == 0
    assert block_q % 8 == 0 or block_q == T
    assert block_s % 8 == 0 or block_s == T
    n_q, n_s = T // block_q, T // block_s

    scale = C ** (-0.5)          # NOTE: full-C scale, as in the PyTorch source
    bf16 = jnp.bfloat16

    # PyTorch split order is k, q, v.  Weights stored (in, out): x @ W == torch x @ W.T.
    wk = w_attn[:, 0 * C:1 * C].astype(bf16)
    wq = w_attn[:, 1 * C:2 * C].astype(bf16)
    wv = w_attn[:, 2 * C:3 * C].astype(bf16)
    wproj = w_proj.astype(bf16)
    wfc1 = w_fc1.astype(bf16)
    wfc2 = w_fc2.astype(bf16)

    def full_spec(a):  # whole-array block, constant index (grid arity 2)
        return pl.BlockSpec(a.shape, lambda b, s, _nd=a.ndim: (0,) * _nd)

    seq_spec = pl.BlockSpec((None, block_s, C), lambda b, s: (b, s, 0))

    # ---- 1) LN1 + K/Q/V projection ----
    kqv_shape = jax.ShapeDtypeStruct((B, T, C), bf16)
    k, q, v = pl.pallas_call(
        functools.partial(_qkv_kernel, scale=scale),
        out_shape=(kqv_shape, kqv_shape, kqv_shape),
        grid=(B, n_s),
        in_specs=[seq_spec, full_spec(ln1g), full_spec(ln1b),
                  full_spec(wk), full_spec(wq), full_spec(wv)],
        out_specs=(seq_spec, seq_spec, seq_spec),
        compiler_params=_compiler_params(
            ("parallel", "parallel"),
            pipelined=[((block_s, C), x.dtype)] + [((block_s, C), bf16)] * 3
                      + [((C, C), bf16)] * 3 + [((1, C), jnp.float32)] * 2,
            resident=[((block_s, C), jnp.float32)] * 3),
    )(x, ln1g, ln1b, wk, wq, wv)

    # ---- 2) causal flash attention, (B, T, C) layout end-to-end ----
    q_spec = pl.BlockSpec((None, block_q, C), lambda b, qi: (b, qi, 0))
    kv_spec = pl.BlockSpec((None, T, C), lambda b, qi: (b, 0, 0))  # resident per batch

    att = pl.pallas_call(
        functools.partial(_attn_kernel, block_q=block_q, n_head=n_head, hd=hd),
        out_shape=jax.ShapeDtypeStruct((B, T, C), bf16),
        grid=(B, n_q),
        in_specs=[q_spec, kv_spec, kv_spec],
        out_specs=q_spec,
        compiler_params=_compiler_params(
            ("parallel", "parallel"),
            pipelined=[((block_q, C), bf16), ((block_q, C), bf16),
                       ((T, C), bf16), ((T, C), bf16)],
            resident=[((block_q, block_q), jnp.float32)] * 2
                     + [((block_q, C), jnp.float32)] * 2),
    )(q, k, v)

    # ---- 3) projection + residual + LN2 + FFN + residual ----
    out = pl.pallas_call(
        _proj_ffn_kernel,
        out_shape=jax.ShapeDtypeStruct((B, T, C), x.dtype),
        grid=(B, n_s),
        in_specs=[seq_spec, seq_spec,
                  full_spec(wproj), full_spec(ln2g), full_spec(ln2b),
                  full_spec(wfc1), full_spec(b_fc1),
                  full_spec(wfc2), full_spec(b_fc2)],
        out_specs=seq_spec,
        compiler_params=_compiler_params(
            ("parallel", "parallel"),
            pipelined=[((block_s, C), x.dtype), ((block_s, C), bf16),
                       ((block_s, C), x.dtype),
                       ((C, C), bf16), ((C, 4 * C), bf16), ((4 * C, C), bf16),
                       ((1, C), jnp.float32), ((1, C), jnp.float32),
                       ((1, 4 * C), jnp.float32), ((1, C), jnp.float32)],
            resident=[((block_s, 4 * C), jnp.float32)] * 2
                     + [((block_s, C), jnp.float32)] * 2),
    )(x, att, wproj, ln2g, ln2b, wfc1, b_fc1, wfc2, b_fc2)

    return out


# --------------------------------------------------------------------------
# Pure-JAX reference (f32), mirroring the PyTorch forward in eval mode
# --------------------------------------------------------------------------
def reference_block(x, params, n_head):
    (ln1g, ln1b, w_attn, w_proj, ln2g, ln2b, w_fc1, b_fc1, w_fc2, b_fc2) = params
    B, T, C = x.shape
    hd = C // n_head
    x = x.astype(jnp.float32)

    h = _layernorm(x, ln1g[0], ln1b[0])
    kqv = h @ w_attn
    k, q, v = kqv[..., :C], kqv[..., C:2 * C], kqv[..., 2 * C:]
    k = k.reshape(B, T, n_head, hd).transpose(0, 2, 1, 3)
    q = q.reshape(B, T, n_head, hd).transpose(0, 2, 1, 3)
    v = v.reshape(B, T, n_head, hd).transpose(0, 2, 1, 3)
    wei = (q @ k.transpose(0, 1, 3, 2)) * C ** (-0.5)
    mask = jnp.tril(jnp.ones((T, T), dtype=bool))
    wei = jnp.where(mask[None, None], wei, -jnp.inf)
    wei = jax.nn.softmax(wei, axis=-1)
    out = (wei @ v).transpose(0, 2, 1, 3).reshape(B, T, C)
    x = x + out @ w_proj

    h = _layernorm(x, ln2g[0], ln2b[0])
    h = jnp.maximum(h @ w_fc1 + b_fc1[0], 0.0)
    x = x + (h @ w_fc2 + b_fc2[0])
    return x


if __name__ == "__main__":
    # Small shapes: batch=2, block_size (seq)=8, n_embd=32, n_head=4, dropout=0.0
    B, T, C, n_head = 2, 8, 32, 4
    key = jax.random.PRNGKey(0)
    keys = jax.random.split(key, 11)

    ln1g = 1.0 + 0.02 * jax.random.normal(keys[0], (1, C), jnp.float32)
    ln1b = 0.02 * jax.random.normal(keys[1], (1, C), jnp.float32)
    w_attn = 0.02 * jax.random.normal(keys[2], (C, 3 * C), jnp.float32)
    w_proj = 0.02 * jax.random.normal(keys[3], (C, C), jnp.float32)
    ln2g = 1.0 + 0.02 * jax.random.normal(keys[4], (1, C), jnp.float32)
    ln2b = 0.02 * jax.random.normal(keys[5], (1, C), jnp.float32)
    w_fc1 = 0.02 * jax.random.normal(keys[6], (C, 4 * C), jnp.float32)
    b_fc1 = 0.02 * jax.random.normal(keys[7], (1, 4 * C), jnp.float32)
    w_fc2 = 0.02 * jax.random.normal(keys[8], (4 * C, C), jnp.float32)
    b_fc2 = 0.02 * jax.random.normal(keys[9], (1, C), jnp.float32)
    params = (ln1g, ln1b, w_attn, w_proj, ln2g, ln2b, w_fc1, b_fc1, w_fc2, b_fc2)

    x = jax.random.normal(keys[10], (B, T, C), jnp.float32)

    out = transformer_block(x, params, n_head)
    out = jax.block_until_ready(out)

    ref = reference_block(x, params, n_head)
    assert out.shape == (B, T, C)
    # bf16 matmul operands + approx reciprocal -> slightly looser tolerance than pure f32
    assert jnp.allclose(out, ref, rtol=1e-2, atol=1e-2), "mismatch vs reference"

    print("KERNEL_OK")
</pallas_src>

<mosaic_0001>
module attributes {stable_mosaic.version = 11 : i64} {
  func.func @_qkv_kernel(%arg0: i32, %arg1: i32, %arg2: memref<1x8x32xf32, #tpu.memory_space<vmem>>, %arg3: memref<1x32xf32, #tpu.memory_space<vmem>>, %arg4: memref<1x32xf32, #tpu.memory_space<vmem>>, %arg5: memref<32x32xbf16, #tpu.memory_space<vmem>>, %arg6: memref<32x32xbf16, #tpu.memory_space<vmem>>, %arg7: memref<32x32xbf16, #tpu.memory_space<vmem>>, %arg8: memref<1x8x32xbf16, #tpu.memory_space<vmem>>, %arg9: memref<1x8x32xbf16, #tpu.memory_space<vmem>>, %arg10: memref<1x8x32xbf16, #tpu.memory_space<vmem>>) attributes {dimension_semantics = [#tpu.dimension_semantics<parallel>, #tpu.dimension_semantics<parallel>], iteration_bounds = array<i64: 2, 1>, scalar_prefetch = 0 : i64, scratch_operands = 0 : i64, tpu.core_type = #tpu.core_type<tc>, window_params = [{transform_indices = @transform_0, window_bounds = array<i64: 1, 8, 32>}, {pipeline_mode = #tpu.pipeline_mode<synchronous>, transform_indices = @transform_1, window_bounds = array<i64: 1, 32>}, {pipeline_mode = #tpu.pipeline_mode<synchronous>, transform_indices = @transform_2, window_bounds = array<i64: 1, 32>}, {pipeline_mode = #tpu.pipeline_mode<synchronous>, transform_indices = @transform_3, window_bounds = array<i64: 32, 32>}, {pipeline_mode = #tpu.pipeline_mode<synchronous>, transform_indices = @transform_4, window_bounds = array<i64: 32, 32>}, {pipeline_mode = #tpu.pipeline_mode<synchronous>, transform_indices = @transform_5, window_bounds = array<i64: 32, 32>}, {transform_indices = @transform_6, window_bounds = array<i64: 1, 8, 32>}, {transform_indices = @transform_7, window_bounds = array<i64: 1, 8, 32>}, {transform_indices = @transform_8, window_bounds = array<i64: 1, 8, 32>}]} {
    %c0 = arith.constant 0 : index
    %c0_0 = arith.constant 0 : index
    %c0_1 = arith.constant 0 : index
    %0 = vector.load %arg2[%c0, %c0_0, %c0_1] : memref<1x8x32xf32, #tpu.memory_space<vmem>>, vector<1x8x32xf32>
    %1 = vector.shape_cast %0 : vector<1x8x32xf32> to vector<8x32xf32>
    %c0_2 = arith.constant 0 : index
    %c0_3 = arith.constant 0 : index
    %2 = vector.load %arg3[%c0_2, %c0_3] : memref<1x32xf32, #tpu.memory_space<vmem>>, vector<1x32xf32>
    %3 = vector.shape_cast %2 : vector<1x32xf32> to vector<32xf32>
    %c0_4 = arith.constant 0 : index
    %c0_5 = arith.constant 0 : index
    %4 = vector.load %arg4[%c0_4, %c0_5] : memref<1x32xf32, #tpu.memory_space<vmem>>, vector<1x32xf32>
    %5 = vector.shape_cast %4 : vector<1x32xf32> to vector<32xf32>
    %cst = arith.constant dense<0.000000e+00> : vector<8xf32>
    %6 = vector.multi_reduction <add>, %1, %cst [1] : vector<8x32xf32> to vector<8xf32>
    %7 = vector.shape_cast %6 : vector<8xf32> to vector<8x1xf32>
    %cst_6 = arith.constant 3.200000e+01 : f32
    %8 = vector.broadcast %cst_6 : f32 to vector<8x1xf32>
    %9 = arith.divf %7, %8 : vector<8x1xf32>
    %10 = vector.broadcast %9 : vector<8x1xf32> to vector<8x32xf32>
    %11 = arith.subf %1, %10 : vector<8x32xf32>
    %12 = arith.mulf %11, %11 : vector<8x32xf32>
    %cst_7 = arith.constant dense<0.000000e+00> : vector<8xf32>
    %13 = vector.multi_reduction <add>, %12, %cst_7 [1] : vector<8x32xf32> to vector<8xf32>
    %14 = vector.shape_cast %13 : vector<8xf32> to vector<8x1xf32>
    %cst_8 = arith.constant 3.200000e+01 : f32
    %15 = vector.broadcast %cst_8 : f32 to vector<8x1xf32>
    %16 = arith.divf %14, %15 : vector<8x1xf32>
    %17 = vector.broadcast %9 : vector<8x1xf32> to vector<8x32xf32>
    %18 = arith.subf %1, %17 : vector<8x32xf32>
    %cst_9 = arith.constant 9.99999974E-6 : f32
    %19 = vector.broadcast %cst_9 : f32 to vector<8x1xf32>
    %20 = arith.addf %16, %19 : vector<8x1xf32>
    %21 = math.rsqrt %20 : vector<8x1xf32>
    %22 = vector.broadcast %21 : vector<8x1xf32> to vector<8x32xf32>
    %23 = arith.mulf %18, %22 : vector<8x32xf32>
    %24 = vector.shape_cast %3 : vector<32xf32> to vector<1x32xf32>
    %25 = vector.broadcast %24 : vector<1x32xf32> to vector<8x32xf32>
    %26 = arith.mulf %23, %25 : vector<8x32xf32>
    %27 = vector.shape_cast %5 : vector<32xf32> to vector<1x32xf32>
    %28 = vector.broadcast %27 : vector<1x32xf32> to vector<8x32xf32>
    %29 = arith.addf %26, %28 : vector<8x32xf32>
    %30 = arith.truncf %29 : vector<8x32xf32> to vector<8x32xbf16>
    %c0_10 = arith.constant 0 : index
    %c0_11 = arith.constant 0 : index
    %31 = vector.load %arg5[%c0_10, %c0_11] : memref<32x32xbf16, #tpu.memory_space<vmem>>, vector<32x32xbf16>
    %cst_12 = arith.constant dense<0.000000e+00> : vector<8x32xf32>
    %32 = tpu.matmul %30, %31, %cst_12 {dimension_numbers = #tpu.dot_dimension_numbers<[1], [0], [0], [1], [0, 0, 1, 1], [], []>} : vector<8x32xbf16>, vector<32x32xbf16>, vector<8x32xf32> -> vector<8x32xf32>
    %33 = arith.truncf %32 : vector<8x32xf32> to vector<8x32xbf16>
    %c0_13 = arith.constant 0 : index
    %c0_14 = arith.constant 0 : index
    %c0_15 = arith.constant 0 : index
    %34 = vector.load %arg8[%c0_13, %c0_14, %c0_15] : memref<1x8x32xbf16, #tpu.memory_space<vmem>>, vector<1x8x32xbf16>
    %35 = vector.shape_cast %34 : vector<1x8x32xbf16> to vector<8x32xbf16>
    %36 = vector.shape_cast %33 : vector<8x32xbf16> to vector<1x8x32xbf16>
    tpu.vector_store %arg8[%c0_13, %c0_14, %c0_15], %36 {strides = array<i32>} : memref<1x8x32xbf16, #tpu.memory_space<vmem>>, vector<1x8x32xbf16>,
    %c0_16 = arith.constant 0 : index
    %c0_17 = arith.constant 0 : index
    %37 = vector.load %arg6[%c0_16, %c0_17] : memref<32x32xbf16, #tpu.memory_space<vmem>>, vector<32x32xbf16>
    %cst_18 = arith.constant dense<0.000000e+00> : vector<8x32xf32>
    %38 = tpu.matmul %30, %37, %cst_18 {dimension_numbers = #tpu.dot_dimension_numbers<[1], [0], [0], [1], [0, 0, 1, 1], [], []>} : vector<8x32xbf16>, vector<32x32xbf16>, vector<8x32xf32> -> vector<8x32xf32>
    %cst_19 = arith.constant 0.176776692 : f32
    %39 = vector.broadcast %cst_19 : f32 to vector<8x32xf32>
    %40 = arith.mulf %38, %39 : vector<8x32xf32>
    %41 = arith.truncf %40 : vector<8x32xf32> to vector<8x32xbf16>
    %c0_20 = arith.constant 0 : index
    %c0_21 = arith.constant 0 : index
    %c0_22 = arith.constant 0 : index
    %42 = vector.load %arg9[%c0_20, %c0_21, %c0_22] : memref<1x8x32xbf16, #tpu.memory_space<vmem>>, vector<1x8x32xbf16>
    %43 = vector.shape_cast %42 : vector<1x8x32xbf16> to vector<8x32xbf16>
    %44 = vector.shape_cast %41 : vector<8x32xbf16> to vector<1x8x32xbf16>
    tpu.vector_store %arg9[%c0_20, %c0_21, %c0_22], %44 {strides = array<i32>} : memref<1x8x32xbf16, #tpu.memory_space<vmem>>, vector<1x8x32xbf16>,
    %c0_23 = arith.constant 0 : index
    %c0_24 = arith.constant 0 : index
    %45 = vector.load %arg7[%c0_23, %c0_24] : memref<32x32xbf16, #tpu.memory_space<vmem>>, vector<32x32xbf16>
    %cst_25 = arith.constant dense<0.000000e+00> : vector<8x32xf32>
    %46 = tpu.matmul %30, %45, %cst_25 {dimension_numbers = #tpu.dot_dimension_numbers<[1], [0], [0], [1], [0, 0, 1, 1], [], []>} : vector<8x32xbf16>, vector<32x32xbf16>, vector<8x32xf32> -> vector<8x32xf32>
    %47 = arith.truncf %46 : vector<8x32xf32> to vector<8x32xbf16>
    %c0_26 = arith.constant 0 : index
    %c0_27 = arith.constant 0 : index
    %c0_28 = arith.constant 0 : index
    %48 = vector.load %arg10[%c0_26, %c0_27, %c0_28] : memref<1x8x32xbf16, #tpu.memory_space<vmem>>, vector<1x8x32xbf16>
    %49 = vector.shape_cast %48 : vector<1x8x32xbf16> to vector<8x32xbf16>
    %50 = vector.shape_cast %47 : vector<8x32xbf16> to vector<1x8x32xbf16>
    tpu.vector_store %arg10[%c0_26, %c0_27, %c0_28], %50 {strides = array<i32>} : memref<1x8x32xbf16, #tpu.memory_space<vmem>>, vector<1x8x32xbf16>,
    return
  }
  func.func @transform_0(%arg0: i32, %arg1: i32) -> (i32, i32, i32) {
    %c0_i32 = arith.constant 0 : i32
    %c0_i32_0 = arith.constant 0 : i32
    return %arg0, %arg1, %c0_i32 : i32, i32, i32
  }
  func.func @transform_1(%arg0: i32, %arg1: i32) -> (i32, i32) {
    %c0_i32 = arith.constant 0 : i32
    %c0_i32_0 = arith.constant 0 : i32
    %c0_i32_1 = arith.constant 0 : i32
    return %c0_i32, %c0_i32_0 : i32, i32
  }
  func.func @transform_2(%arg0: i32, %arg1: i32) -> (i32, i32) {
    %c0_i32 = arith.constant 0 : i32
    %c0_i32_0 = arith.constant 0 : i32
    %c0_i32_1 = arith.constant 0 : i32
    return %c0_i32, %c0_i32_0 : i32, i32
  }
  func.func @transform_3(%arg0: i32, %arg1: i32) -> (i32, i32) {
    %c0_i32 = arith.constant 0 : i32
    %c0_i32_0 = arith.constant 0 : i32
    %c0_i32_1 = arith.constant 0 : i32
    return %c0_i32, %c0_i32_0 : i32, i32
  }
  func.func @transform_4(%arg0: i32, %arg1: i32) -> (i32, i32) {
    %c0_i32 = arith.constant 0 : i32
    %c0_i32_0 = arith.constant 0 : i32
    %c0_i32_1 = arith.constant 0 : i32
    return %c0_i32, %c0_i32_0 : i32, i32
  }
  func.func @transform_5(%arg0: i32, %arg1: i32) -> (i32, i32) {
    %c0_i32 = arith.constant 0 : i32
    %c0_i32_0 = arith.constant 0 : i32
    %c0_i32_1 = arith.constant 0 : i32
    return %c0_i32, %c0_i32_0 : i32, i32
  }
  func.func @transform_6(%arg0: i32, %arg1: i32) -> (i32, i32, i32) {
    %c0_i32 = arith.constant 0 : i32
    %c0_i32_0 = arith.constant 0 : i32
    return %arg0, %arg1, %c0_i32 : i32, i32, i32
  }
  func.func @transform_7(%arg0: i32, %arg1: i32) -> (i32, i32, i32) {
    %c0_i32 = arith.constant 0 : i32
    %c0_i32_0 = arith.constant 0 : i32
    return %arg0, %arg1, %c0_i32 : i32, i32, i32
  }
  func.func @transform_8(%arg0: i32, %arg1: i32) -> (i32, i32, i32) {
    %c0_i32 = arith.constant 0 : i32
    %c0_i32_0 = arith.constant 0 : i32
    return %arg0, %arg1, %c0_i32 : i32, i32, i32
  }
}

</mosaic_0001>

<llo_original>
// kernel: tpu_custom_call.1
$region0: #{tpu_custom_call.1}
  #allocation0 [shape = 'u32[]', space=smem, size = 0x4, offset = 0x4, fixed_abs, tag = 'smem constant byte address 0x4 - core index']
  #allocation1 [shape = 'u32[144,128]{1,0:T(1,128)}', space=vmem, size = 0x12000, scoped, tag = 'internal scratch']
  %s0 = inlined_call_operand.hbm [shape: f32[2,8,32], index: 0, kind: input, shape index: {}]
  %s1 = inlined_call_operand.vmem [shape: f32[1,32], index: 1, kind: input, shape index: {}]
  %s2 = inlined_call_operand.vmem [shape: f32[1,32], index: 2, kind: input, shape index: {}]
  %s3 = inlined_call_operand.hbm [shape: bf16[32,32], index: 3, kind: input, shape index: {}]
  %s4 = inlined_call_operand.hbm [shape: bf16[32,32], index: 4, kind: input, shape index: {}]
  %s5 = inlined_call_operand.vmem [shape: bf16[32,32], index: 5, kind: input, shape index: {}]
  %s6 = inlined_call_operand.hbm [shape: bf16[2,8,32], index: 6, kind: output, shape index: {0}]
  %s7 = inlined_call_operand.hbm [shape: bf16[2,8,32], index: 7, kind: output, shape index: {1}]
  %s8 = inlined_call_operand.hbm [shape: bf16[2,8,32], index: 8, kind: output, shape index: {2}]
  %9 = xla_tuple %s6, %s7, %s8
  %s10 = sld [smem:[#allocation0]]
  $region85: #{tpu_custom_call.1} parent=0
    _
  %s12 = ssub.s32 1, %s10
  %s13 = scalar_select 0, %s12, %s10
  $region1: #{tpu_custom_call.1} parent=0
    #allocation2 [shape = 'u8[8192]{0}', space=vmem, size = 0x2000, scoped, tag = 'input window, operand 0']
    #allocation3 [shape = 's32[2]{0}', space=sflag, size = 0x8, scoped, tag = 'scoped memory for tpu_custom_call.1']
    #allocation4 [shape = 's32[2]{0}', space=sflag, size = 0x8, scoped, tag = 'scoped memory for tpu_custom_call.1']
    #allocation5 [shape = 'u8[8192]{0}', space=vmem, size = 0x2000, scoped, tag = 'input window, operand 3, single buffered']
    #allocation6 [shape = 's32[1]{0}', space=sflag, size = 0x4, scoped, tag = 'scoped memory for tpu_custom_call.1']
    #allocation7 [shape = 'u8[8192]{0}', space=vmem, size = 0x2000, scoped, tag = 'input window, operand 4, single buffered']
    #allocation8 [shape = 'u8[4096]{0}', space=vmem, size = 0x1000, scoped, tag = 'output window, operand 0']
    #allocation9 [shape = 'u8[4096]{0}', space=vmem, size = 0x1000, scoped, tag = 'output window, operand 1']
    #allocation10 [shape = 's32[2]{0}', space=sflag, size = 0x8, scoped, tag = 'scoped memory for tpu_custom_call.1']
    #allocation11 [shape = 'u8[4096]{0}', space=vmem, size = 0x1000, scoped, tag = 'output window, operand 2']
    %14 = vsyncpa [#allocation3], 0
    %s15 = scalar_lea.sflag [#allocation3], 1
    %16 = vsyncpa %s15, 0
    %17 = vsyncpa [#allocation6], 0
    %18 = vsyncpa [#allocation4], 0
    %s19 = scalar_lea.sflag [#allocation4], 1
    %20 = vsyncpa %s19, 0
    %21 = vsyncpa [#allocation10], 0
    %s22 = scalar_lea.sflag [#allocation10], 1
    %23 = vsyncpa %s22, 0
    loop: start=0, step=1, limit=4
    $region2: #{tpu_custom_call.1} parent=1 // loop_pre_header
      _
    $region3: #{tpu_custom_call.1} parent=1 // loop_header
      %s25 = sphi 0, %s29
      %p26 = scmp.ge.s32.totalorder %s25, 4
      %s32 = sphi 0, %s44
      %s33 = sphi 0, %s40
      %s34 = sphi 0, %s32
      %s35 = sphi 0, %s33
      %s36 = sphi 0, %s34
      %s37 = sphi 0, %s35
      %s49 = sphi 0, %s51
      %s52 = sphi 0, %s49
      %s53 = sphi 0, %s52
      %s69 = sphi 0, %s53
      %s73 = sphi 0, %s73
      %s75 = sphi 0, %s73
      %s76 = sphi 0, %s75
      %s90 = sphi 0, %s76
      %s94 = sphi 0, %s94
      %s96 = sphi 0, %s94
      %s97 = sphi 0, %s96
      %s111 = sphi 0, %s97
      %s115 = sphi 0, %s115
      %s117 = sphi 0, %s115
      %s118 = sphi 0, %s117
      %s132 = sphi 0, %s118
      %s136 = sphi 0, %s136
      %s138 = sphi 0, %s136
      %s139 = sphi 0, %s138
      %s153 = sphi 0, %s139
      %s157 = sphi 0, %s157
      %s159 = sphi 0, %s157
      %s160 = sphi 0, %s159
      %s174 = sphi 0, %s160
      %s182 = sphi 0, %s184
      %s185 = sphi 0, %s182
      %s186 = sphi 0, %s185
      %s202 = sphi 0, %s186
      %s210 = sphi 0, %s212
      %s213 = sphi 0, %s210
      %s214 = sphi 0, %s213
      %s230 = sphi 0, %s214
      %s238 = sphi 0, %s240
      %s241 = sphi 0, %s238
      %s242 = sphi 0, %s241
      %s258 = sphi 0, %s242
    $region4: #{tpu_custom_call.1} parent=1 // loop_header_branch
      %28 = sbr.rel (%p26) target = $region8
    $region5: #{tpu_custom_call.1} parent=1 // loop_body
      %s30 = ssub.s32 %s25, 1
      %s31 = ssub.s32 %s25, 2
      %s38 = sadd.s32 1, %s33
      %p39 = scmp.ge.s32.totalorder %s38, 1
      %s40 = scalar_select %p39, 0, %s38
      %s41 = sadd.s32 1, %s32
      %s42 = scalar_select %p39, %s41, %s32
      %p43 = scmp.ge.s32.totalorder %s42, 2
      %s44 = scalar_select %p43, 0, %s42
      %s45 = ssub.s32 %s32, %s44
      %s46 = ssub.s32 %s33, %s40
      %s47 = sor.u32 %s45, %s46
      %p48 = scmp.eq.s32.totalorder %s47, 0
      %s50 = sadd.s32 %s49, 1
      %s51 = scalar_select %p48, %s49, %s50
      %p54 = pneg %p48
      %p55 = scmp.eq.s32.totalorder %s25, 1
      %p56 = por %p54, %p55
      %p57 = scmp.ne.s32.totalorder %s49, %s52
      %p58 = scmp.eq.s32.totalorder %s25, 0
      %p59 = por %p57, %p58
      %p60 = scmp.ne.s32.totalorder %s49, %s52
      %p61 = scmp.eq.s32.totalorder %s30, 1
      %p62 = por %p60, %p61
      %p63 = scmp.ne.s32.totalorder %s52, %s53
      %p64 = scmp.eq.s32.totalorder %s30, 0
      %p65 = por %p63, %p64
      %p66 = scmp.ne.s32.totalorder %s52, %s53
      %p67 = scmp.eq.s32.totalorder %s31, 1
      %p68 = por %p66, %p67
      %p70 = scmp.ne.s32.totalorder %s53, %s69
      %p71 = scmp.eq.s32.totalorder %s31, 0
      %p72 = por %p70, %p71
      %s74 = sadd.s32 %s73, 1
      %p77 = scmp.eq.s32.totalorder %s25, 1
      %p78 = scmp.ne.s32.totalorder %s73, %s75
      %p79 = scmp.eq.s32.totalorder %s25, 0
      %p80 = por %p78, %p79
      %p81 = scmp.ne.s32.totalorder %s73, %s75
      %p82 = scmp.eq.s32.totalorder %s30, 1
      %p83 = por %p81, %p82
      %p84 = scmp.ne.s32.totalorder %s75, %s76
      %p85 = scmp.eq.s32.totalorder %s30, 0
      %p86 = por %p84, %p85
      %p87 = scmp.ne.s32.totalorder %s75, %s76
      %p88 = scmp.eq.s32.totalorder %s31, 1
      %p89 = por %p87, %p88
      %p91 = scmp.ne.s32.totalorder %s76, %s90
      %p92 = scmp.eq.s32.totalorder %s31, 0
      %p93 = por %p91, %p92
      %s95 = sadd.s32 %s94, 1
      %p98 = scmp.eq.s32.totalorder %s25, 1
      %p99 = scmp.ne.s32.totalorder %s94, %s96
      %p100 = scmp.eq.s32.totalorder %s25, 0
      %p101 = por %p99, %p100
      %p102 = scmp.ne.s32.totalorder %s94, %s96
      %p103 = scmp.eq.s32.totalorder %s30, 1
      %p104 = por %p102, %p103
      %p105 = scmp.ne.s32.totalorder %s96, %s97
      %p106 = scmp.eq.s32.totalorder %s30, 0
      %p107 = por %p105, %p106
      %p108 = scmp.ne.s32.totalorder %s96, %s97
      %p109 = scmp.eq.s32.totalorder %s31, 1
      %p110 = por %p108, %p109
      %p112 = scmp.ne.s32.totalorder %s97, %s111
      %p113 = scmp.eq.s32.totalorder %s31, 0
      %p114 = por %p112, %p113
      %s116 = sadd.s32 %s115, 1
      %p119 = scmp.eq.s32.totalorder %s25, 1
      %p120 = scmp.ne.s32.totalorder %s115, %s117
      %p121 = scmp.eq.s32.totalorder %s25, 0
      %p122 = por %p120, %p121
      %p123 = scmp.ne.s32.totalorder %s115, %s117
      %p124 = scmp.eq.s32.totalorder %s30, 1
      %p125 = por %p123, %p124
      %p126 = scmp.ne.s32.totalorder %s117, %s118
      %p127 = scmp.eq.s32.totalorder %s30, 0
      %p128 = por %p126, %p127
      %p129 = scmp.ne.s32.totalorder %s117, %s118
      %p130 = scmp.eq.s32.totalorder %s31, 1
      %p131 = por %p129, %p130
      %p133 = scmp.ne.s32.totalorder %s118, %s132
      %p134 = scmp.eq.s32.totalorder %s31, 0
      %p135 = por %p133, %p134
      %s137 = sadd.s32 %s136, 1
      %p140 = scmp.eq.s32.totalorder %s25, 1
      %p141 = scmp.ne.s32.totalorder %s136, %s138
      %p142 = scmp.eq.s32.totalorder %s25, 0
      %p143 = por %p141, %p142
      %p144 = scmp.ne.s32.totalorder %s136, %s138
      %p145 = scmp.eq.s32.totalorder %s30, 1
      %p146 = por %p144, %p145
      %p147 = scmp.ne.s32.totalorder %s138, %s139
      %p148 = scmp.eq.s32.totalorder %s30, 0
      %p149 = por %p147, %p148
      %p150 = scmp.ne.s32.totalorder %s138, %s139
      %p151 = scmp.eq.s32.totalorder %s31, 1
      %p152 = por %p150, %p151
      %p154 = scmp.ne.s32.totalorder %s139, %s153
      %p155 = scmp.eq.s32.totalorder %s31, 0
      %p156 = por %p154, %p155
      %s158 = sadd.s32 %s157, 1
      %p161 = scmp.eq.s32.totalorder %s25, 1
      %p162 = scmp.ne.s32.totalorder %s157, %s159
      %p163 = scmp.eq.s32.totalorder %s25, 0
      %p164 = por %p162, %p163
      %p165 = scmp.ne.s32.totalorder %s157, %s159
      %p166 = scmp.eq.s32.totalorder %s30, 1
      %p167 = por %p165, %p166
      %p168 = scmp.ne.s32.totalorder %s159, %s160
      %p169 = scmp.eq.s32.totalorder %s30, 0
      %p170 = por %p168, %p169
      %p171 = scmp.ne.s32.totalorder %s159, %s160
      %p172 = scmp.eq.s32.totalorder %s31, 1
      %p173 = por %p171, %p172
      %p175 = scmp.ne.s32.totalorder %s160, %s174
      %p176 = scmp.eq.s32.totalorder %s31, 0
      %p177 = por %p175, %p176
      %s178 = ssub.s32 %s32, %s44
      %s179 = ssub.s32 %s33, %s40
      %s180 = sor.u32 %s178, %s179
      %p181 = scmp.eq.s32.totalorder %s180, 0
      %s183 = sadd.s32 %s182, 1
      %s184 = scalar_select %p181, %s182, %s183
      %p187 = pneg %p181
      %p188 = scmp.eq.s32.totalorder %s25, 1
      %p189 = por %p187, %p188
      %p190 = scmp.ne.s32.totalorder %s182, %s185
      %p191 = scmp.eq.s32.totalorder %s25, 0
      %p192 = por %p190, %p191
      %p193 = scmp.ne.s32.totalorder %s182, %s185
      %p194 = scmp.eq.s32.totalorder %s30, 1
      %p195 = por %p193, %p194
      %p196 = scmp.ne.s32.totalorder %s185, %s186
      %p197 = scmp.eq.s32.totalorder %s30, 0
      %p198 = por %p196, %p197
      %p199 = scmp.ne.s32.totalorder %s185, %s186
      %p200 = scmp.eq.s32.totalorder %s31, 1
      %p201 = por %p199, %p200
      %p203 = scmp.ne.s32.totalorder %s186, %s202
      %p204 = scmp.eq.s32.totalorder %s31, 0
      %p205 = por %p203, %p204
      %s206 = ssub.s32 %s32, %s44
      %s207 = ssub.s32 %s33, %s40
      %s208 = sor.u32 %s206, %s207
      %p209 = scmp.eq.s32.totalorder %s208, 0
      %s211 = sadd.s32 %s210, 1
      %s212 = scalar_select %p209, %s210, %s211
      %p215 = pneg %p209
      %p216 = scmp.eq.s32.totalorder %s25, 1
      %p217 = por %p215, %p216
      %p218 = scmp.ne.s32.totalorder %s210, %s213
      %p219 = scmp.eq.s32.totalorder %s25, 0
      %p220 = por %p218, %p219
      %p221 = scmp.ne.s32.totalorder %s210, %s213
      %p222 = scmp.eq.s32.totalorder %s30, 1
      %p223 = por %p221, %p222
      %p224 = scmp.ne.s32.totalorder %s213, %s214
      %p225 = scmp.eq.s32.totalorder %s30, 0
      %p226 = por %p224, %p225
      %p227 = scmp.ne.s32.totalorder %s213, %s214
      %p228 = scmp.eq.s32.totalorder %s31, 1
      %p229 = por %p227, %p228
      %p231 = scmp.ne.s32.totalorder %s214, %s230
      %p232 = scmp.eq.s32.totalorder %s31, 0
      %p233 = por %p231, %p232
      %s234 = ssub.s32 %s32, %s44
      %s235 = ssub.s32 %s33, %s40
      %s236 = sor.u32 %s234, %s235
      %p237 = scmp.eq.s32.totalorder %s236, 0
      %s239 = sadd.s32 %s238, 1
      %s240 = scalar_select %p237, %s238, %s239
      %p243 = pneg %p237
      %p244 = scmp.eq.s32.totalorder %s25, 1
      %p245 = por %p243, %p244
      %p246 = scmp.ne.s32.totalorder %s238, %s241
      %p247 = scmp.eq.s32.totalorder %s25, 0
      %p248 = por %p246, %p247
      %p249 = scmp.ne.s32.totalorder %s238, %s241
      %p250 = scmp.eq.s32.totalorder %s30, 1
      %p251 = por %p249, %p250
      %p252 = scmp.ne.s32.totalorder %s241, %s242
      %p253 = scmp.eq.s32.totalorder %s30, 0
      %p254 = por %p252, %p253
      %p255 = scmp.ne.s32.totalorder %s241, %s242
      %p256 = scmp.eq.s32.totalorder %s31, 1
      %p257 = por %p255, %p256
      %p259 = scmp.ne.s32.totalorder %s242, %s258
      %p260 = scmp.eq.s32.totalorder %s31, 0
      %p261 = por %p259, %p260
      %p262 = scmp.le.s32.totalorder 1, %s25
      %p263 = scmp.lt.s32.totalorder %s25, 3
      %p264 = pnand %p262, %p263
      %p265 = pneg %p264
      // Predicated region
      $region9: #{tpu_custom_call.1} parent=5 // pred_check
        _
      $region10: #{tpu_custom_call.1} parent=5 // pred_check_branch
        %267 = sbr.rel (%p264) target = $region12
      $region11: #{tpu_custom_call.1} parent=5 // pred_region
        %s268 = ssub.s32 %s25, 1
        // Predicated region
        $region13: #{tpu_custom_call.1} parent=11 // pred_check
          %p269 = pneg %p86
        $region14: #{tpu_custom_call.1} parent=11 // pred_check_branch
          %271 = sbr.rel (%p269) target = $region16
        $region15: #{tpu_custom_call.1} parent=11 // pred_region
          _
        $region16: #{tpu_custom_call.1} parent=11 // pred_fallthru
          _
        // Predicated region
        $region17: #{tpu_custom_call.1} parent=11 // pred_check
          %p272 = pneg %p107
        $region18: #{tpu_custom_call.1} parent=11 // pred_check_branch
          %274 = sbr.rel (%p272) target = $region20
        $region19: #{tpu_custom_call.1} parent=11 // pred_region
          _
        $region20: #{tpu_custom_call.1} parent=11 // pred_fallthru
          _
        // Predicated region
        $region21: #{tpu_custom_call.1} parent=11 // pred_check
          %p275 = pneg %p128
        $region22: #{tpu_custom_call.1} parent=11 // pred_check_branch
          %277 = sbr.rel (%p275) target = $region24
        $region23: #{tpu_custom_call.1} parent=11 // pred_region
          %s279 = ssub.s32 256, 256
          %280 = vsyncadd [#allocation6], %s279
          %s281 = sshll.u32 [#allocation5], 4
          %s282 = int_to_ptr.vmem [resolvable:$true] %s281
          %287 = dma.hbm_to_vmem [thread:$0]  %s3, 256, %s282, [#allocation6], 64, 64, 4
        $region24: #{tpu_custom_call.1} parent=11 // pred_fallthru
          _
        // Predicated region
        $region25: #{tpu_custom_call.1} parent=11 // pred_check
          %p288 = pneg %p149
        $region26: #{tpu_custom_call.1} parent=11 // pred_check_branch
          %290 = sbr.rel (%p288) target = $region28
        $region27: #{tpu_custom_call.1} parent=11 // pred_region
          %s292 = ssub.s32 256, 256
          %293 = vsyncadd [#allocation6], %s292
          %s294 = sshll.u32 [#allocation7], 4
          %s295 = int_to_ptr.vmem [resolvable:$true] %s294
          %300 = dma.hbm_to_vmem [thread:$0]  %s4, 256, %s295, [#allocation6], 64, 64, 4
        $region28: #{tpu_custom_call.1} parent=11 // pred_fallthru
          _
        // Predicated region
        $region29: #{tpu_custom_call.1} parent=11 // pred_check
          %p301 = pneg %p170
        $region30: #{tpu_custom_call.1} parent=11 // pred_check_branch
          %303 = sbr.rel (%p301) target = $region32
        $region31: #{tpu_custom_call.1} parent=11 // pred_region
          _
        $region32: #{tpu_custom_call.1} parent=11 // pred_fallthru
          _
      $region12: #{tpu_custom_call.1} parent=5 // pred_fallthru
        _
      %p304 = scmp.lt.s32.totalorder %s25, 2
      // Predicated region
      $region33: #{tpu_custom_call.1} parent=5 // pred_check
        %p305 = pneg %p304
      $region34: #{tpu_custom_call.1} parent=5 // pred_check_branch
        %307 = sbr.rel (%p305) target = $region36
      $region35: #{tpu_custom_call.1} parent=5 // pred_region
        // Predicated region
        $region37: #{tpu_custom_call.1} parent=35 // pred_check
          %p308 = pneg %p59
        $region38: #{tpu_custom_call.1} parent=35 // pred_check_branch
          %310 = sbr.rel (%p308) target = $region40
        $region39: #{tpu_custom_call.1} parent=35 // pred_region
          %s311 = sand.u32 %s49, 1
          %s312 = scalar_lea.sflag [#allocation3], %s311
          %s313 = sand.u32 %s49, 1
          %s314 = smul.addr %s313, 8
          %s315 = scalar_lea.vmem [#allocation2], %s314
          %s317 = ssub.s32 128, 128
          %318 = vsyncadd %s312, %s317
          %s319 = sadd.s32 %s33, %s32
          %s320 = smul.addr %s319, 128
          %s321 = scalar_lea.hbm %s0, %s320
          %s323 = sshll.u32 %s315, 4
          %s324 = int_to_ptr.vmem [resolvable:$true] %s323
          %326 = dma.hbm_to_vmem [thread:$0]  %s321, 128, %s324, %s312
        $region40: #{tpu_custom_call.1} parent=35 // pred_fallthru
          _
      $region36: #{tpu_custom_call.1} parent=5 // pred_fallthru
        _
      %p327 = scmp.le.s32.totalorder 1, %s25
      %p328 = scmp.lt.s32.totalorder %s25, 3
      %p329 = pnand %p327, %p328
      %p330 = pneg %p329
      // Predicated region
      $region41: #{tpu_custom_call.1} parent=5 // pred_check
        _
      $region42: #{tpu_custom_call.1} parent=5 // pred_check_branch
        %332 = sbr.rel (%p329) target = $region44
      $region43: #{tpu_custom_call.1} parent=5 // pred_region
        %s333 = ssub.s32 %s25, 1
        %s334 = sand.u32 %s52, 1
        %s335 = scalar_lea.sflag [#allocation3], %s334
        %s336 = sand.u32 %s52, 1
        %s337 = smul.addr %s336, 8
        %s338 = scalar_lea.vmem [#allocation2], %s337
        // Predicated region
        $region45: #{tpu_custom_call.1} parent=43 // pred_check
          %p339 = pneg %p65
        $region46: #{tpu_custom_call.1} parent=43 // pred_check_branch
          %341 = sbr.rel (%p339) target = $region48
        $region47: #{tpu_custom_call.1} parent=43 // pred_region
          %342 = dma.done %s335, 128
        $region48: #{tpu_custom_call.1} parent=43 // pred_fallthru
          _
        // Predicated region
        $region49: #{tpu_custom_call.1} parent=43 // pred_check
          %p343 = pneg %p128
        $region50: #{tpu_custom_call.1} parent=43 // pred_check_branch
          %345 = sbr.rel (%p343) target = $region52
        $region51: #{tpu_custom_call.1} parent=43 // pred_region
          %346 = dma.done [#allocation6], 256
        $region52: #{tpu_custom_call.1} parent=43 // pred_fallthru
          _
        // Predicated region
        $region53: #{tpu_custom_call.1} parent=43 // pred_check
          %p347 = pneg %p149
        $region54: #{tpu_custom_call.1} parent=43 // pred_check_branch
          %349 = sbr.rel (%p347) target = $region56
        $region55: #{tpu_custom_call.1} parent=43 // pred_region
          %350 = dma.done [#allocation6], 256
        $region56: #{tpu_custom_call.1} parent=43 // pred_fallthru
          _
        %s351 = sand.u32 %s52, 1
        %s352 = scalar_lea.sflag [#allocation3], %s351
        %s353 = sand.u32 %s52, 1
        %s354 = smul.addr %s353, 8
        %s355 = scalar_lea.vmem [#allocation2], %s354
        %p356 = pneg %p65
        %p357 = pneg %p62
        %p358 = pneg %p86
        %p359 = pneg %p83
        %p360 = pneg %p107
        %p361 = pneg %p104
        %p362 = pneg %p128
        %p363 = pneg %p125
        %p364 = pneg %p149
        %p365 = pneg %p146
        %p366 = pneg %p170
        %p367 = pneg %p167
        %p368 = pneg %p198
        %p369 = pneg %p195
        %s370 = sand.u32 %s185, 1
        %s371 = scalar_lea.sflag [#allocation4], %s370
        %s372 = sand.u32 %s185, 1
        %s373 = smul.addr %s372, 4
        %s374 = scalar_lea.vmem [#allocation8], %s373
        %p375 = pneg %p226
        %p376 = pneg %p223
        %s377 = sand.u32 %s30, 1
        %s378 = scalar_lea.sflag [#allocation10], %s377
        %s379 = sand.u32 %s213, 1
        %s380 = smul.addr %s379, 4
        %s381 = scalar_lea.vmem [#allocation9], %s380
        %p382 = pneg %p254
        %p383 = pneg %p251
        %s384 = sand.u32 %s30, 1
        %s385 = scalar_lea.sflag [#allocation10], %s384
        %s386 = sand.u32 %s241, 1
        %s387 = smul.addr %s386, 4
        %s388 = scalar_lea.vmem [#allocation11], %s387
        %v390 = vld [vmem:[%s338] sm:$0xff]
        %v391 = vld [vmem:[%s1] sm:$0x1]
        %v392 = vld [vmem:[%s2] sm:$0x1]
        %vm393 = vcmask 261120
        %v394 = vsel %vm393, %v390, 0.0
        %395 = vadd.xlane.f32.xlu0 %v394
        %v396 = vpop.xlane.xlu0 %395
        %v397 = vrcp.pop 32.0
        %v398 = vmul.f32 %v396, %v397
        %v399 = vsub.f32 %v390, %v398
        %v400 = vmul.f32 %v399, %v399
        %v401 = vsel %vm393, %v400, 0.0
        %402 = vadd.xlane.f32.xlu0 %v401
        %v403 = vpop.xlane.xlu0 %402
        %v404 = vmul.f32 %v403, %v397
        %v405 = vadd.f32 %v404, 1e-05
        %v406 = vrsqrt.pop %v405
        %v407 = vmul.f32 %v399, %v406
        %v409 = vlaneseq
        %v410 = vshrl.u32 %v409, 7
        %v411 = vsub.s32 0, %v410
        %v412 = vrot.slane %v391, %v411
        %v414 = vmul.f32 %v407, %v412
        %v416 = vlaneseq
        %v417 = vshrl.u32 %v416, 7
        %v418 = vsub.s32 0, %v417
        %v419 = vrot.slane %v392, %v418
        %v421 = vadd.f32 %v414, %v419
        %v422 = vpack.c.bf16 %v421, %v421
        %v423 = vld [vmem:[#allocation5] sm:$0xf]
        %v424 = vld [vmem:[#allocation5 + $0x4] sm:$0xf]
        %v425 = vld [vmem:[#allocation5 + $0x8] sm:$0xf]
        %v426 = vld [vmem:[#allocation5 + $0xc] sm:$0xf]
        %v431 = vunpack.c.l.b16 %v423
        %v432 = vunpack.c.l.b16 %v424
        %v433 = vunpack.c.l.b16 %v425
        %v434 = vunpack.c.l.b16 %v426
        %v435 = vpack.c.b16 %v432, %v431
        %v436 = vpack.c.b16 %v434, %v433
        %v440 = vsel %vm393, %v422, 0
        %442 = vmatprep.subr.bf16.mxu0 0
        %443 = vmatpush1.bf16.msra.mxu0 %v435
        %444 = vmatprep.subr.bf16.mxu0 0
        %445 = vmatpush1.bf16.msra.mxu0 %v436
        %446 = vmatprep.subr.bf16.mxu0 0
        %447 = vmatpush1.bf16.msra.mxu0 0
        %448 = vmatprep.subr.bf16.mxu0 0
        %449 = vmatpush1.bf16.msra.mxu0 0
        %450 = vmatprep.subr.bf16.mxu0 0
        %451 = vmatpush1.bf16.msra.mxu0 0
        %452 = vmatprep.subr.bf16.mxu0 0
        %453 = vmatpush1.bf16.msra.mxu0 0
        %454 = vmatprep.subr.bf16.mxu0 0
        %455 = vmatpush1.bf16.msra.mxu0 0
        %456 = vmatprep.subr.bf16.mxu0 0
        %457 = vmatpush1.bf16.msra.mxu0 0
        %458 = vmatprep.subr.bf16.mxu0 0
        %459 = vmatpush1.bf16.msra.mxu0 0
        %460 = vmatprep.subr.bf16.mxu0 0
        %461 = vmatpush1.bf16.msra.mxu0 0
        %462 = vmatprep.subr.bf16.mxu0 0
        %463 = vmatpush1.bf16.msra.mxu0 0
        %464 = vmatprep.subr.bf16.mxu0 0
        %465 = vmatpush1.bf16.msra.mxu0 0
        %466 = vmatprep.subr.bf16.mxu0 0
        %467 = vmatpush1.bf16.msra.mxu0 0
        %468 = vmatprep.subr.bf16.mxu0 0
        %469 = vmatpush1.bf16.msra.mxu0 0
        %470 = vmatprep.subr.bf16.mxu0 0
        %471 = vmatpush1.bf16.msra.mxu0 0
        %472 = vmatprep.subr.bf16.mxu0 0
        %473 = vmatpush1.bf16.msra.mxu0 0
        %474 = vmatprep.mubr.bf16.mxu0 0
        %475 = vmatmul.mubr.bf16.gmra.mrb[0].mxu0 %v440
        %v476 = vpop.f32.mrb[0].mxu0
        %v477 = vadd.f32 0.0, %v476
        %v478 = vpop.f32.mrb[0].mxu0
        %v479 = vpop.f32.mrb[0].mxu0
        %v480 = vpop.f32.mrb[0].mxu0
        %481 = vdwg.mxu0
        %v482 = vpack.c.bf16 %v477, %v477
        %vm483 = vcmask 257024
        %484 = vst.msk [vmem:[%s374] sm:$0xf] %vm483, %v482
        %v485 = vld [vmem:[#allocation7] sm:$0xf]
        %v486 = vld [vmem:[#allocation7 + $0x4] sm:$0xf]
        %v487 = vld [vmem:[#allocation7 + $0x8] sm:$0xf]
        %v488 = vld [vmem:[#allocation7 + $0xc] sm:$0xf]
        %v493 = vunpack.c.l.b16 %v485
        %v494 = vunpack.c.l.b16 %v486
        %v495 = vunpack.c.l.b16 %v487
        %v496 = vunpack.c.l.b16 %v488
        %v497 = vpack.c.b16 %v494, %v493
        %v498 = vpack.c.b16 %v496, %v495
        %501 = vmatprep.subr.bf16.mxu0 0
        %502 = vmatpush1.bf16.msra.mxu0 %v497
        %503 = vmatprep.subr.bf16.mxu0 0
        %504 = vmatpush1.bf16.msra.mxu0 %v498
        %505 = vmatprep.subr.bf16.mxu0 0
        %506 = vmatpush1.bf16.msra.mxu0 0
        %507 = vmatprep.subr.bf16.mxu0 0
        %508 = vmatpush1.bf16.msra.mxu0 0
        %509 = vmatprep.subr.bf16.mxu0 0
        %510 = vmatpush1.bf16.msra.mxu0 0
        %511 = vmatprep.subr.bf16.mxu0 0
        %512 = vmatpush1.bf16.msra.mxu0 0
        %513 = vmatprep.subr.bf16.mxu0 0
        %514 = vmatpush1.bf16.msra.mxu0 0
        %515 = vmatprep.subr.bf16.mxu0 0
        %516 = vmatpush1.bf16.msra.mxu0 0
        %517 = vmatprep.subr.bf16.mxu0 0
        %518 = vmatpush1.bf16.msra.mxu0 0
        %519 = vmatprep.subr.bf16.mxu0 0
        %520 = vmatpush1.bf16.msra.mxu0 0
        %521 = vmatprep.subr.bf16.mxu0 0
        %522 = vmatpush1.bf16.msra.mxu0 0
        %523 = vmatprep.subr.bf16.mxu0 0
        %524 = vmatpush1.bf16.msra.mxu0 0
        %525 = vmatprep.subr.bf16.mxu0 0
        %526 = vmatpush1.bf16.msra.mxu0 0
        %527 = vmatprep.subr.bf16.mxu0 0
        %528 = vmatpush1.bf16.msra.mxu0 0
        %529 = vmatprep.subr.bf16.mxu0 0
        %530 = vmatpush1.bf16.msra.mxu0 0
        %531 = vmatprep.subr.bf16.mxu0 0
        %532 = vmatpush1.bf16.msra.mxu0 0
        %533 = vmatprep.mubr.bf16.mxu0 0
        %534 = vmatmul.mubr.bf16.gmra.mrb[0].mxu0 %v440
        %v535 = vpop.f32.mrb[0].mxu0
        %v536 = vadd.f32 0.0, %v535
        %v537 = vpop.f32.mrb[0].mxu0
        %v538 = vpop.f32.mrb[0].mxu0
        %v539 = vpop.f32.mrb[0].mxu0
        %540 = vdwg.mxu0
        %v541 = vmul.f32 %v536, 0.17677669
        %v542 = vpack.c.bf16 %v541, %v541
        %543 = vst.msk [vmem:[%s381] sm:$0xf] %vm483, %v542
        %v544 = vld [vmem:[%s5] sm:$0xf]
        %v545 = vld [vmem:[%s5 + $0x4] sm:$0xf]
        %v546 = vld [vmem:[%s5 + $0x8] sm:$0xf]
        %v547 = vld [vmem:[%s5 + $0xc] sm:$0xf]
        %v552 = vunpack.c.l.b16 %v544
        %v553 = vunpack.c.l.b16 %v545
        %v554 = vunpack.c.l.b16 %v546
        %v555 = vunpack.c.l.b16 %v547
        %v556 = vpack.c.b16 %v553, %v552
        %v557 = vpack.c.b16 %v555, %v554
        %560 = vmatprep.subr.bf16.mxu0 0
        %561 = vmatpush1.bf16.msra.mxu0 %v556
        %562 = vmatprep.subr.bf16.mxu0 0
        %563 = vmatpush1.bf16.msra.mxu0 %v557
        %564 = vmatprep.subr.bf16.mxu0 0
        %565 = vmatpush1.bf16.msra.mxu0 0
        %566 = vmatprep.subr.bf16.mxu0 0
        %567 = vmatpush1.bf16.msra.mxu0 0
        %568 = vmatprep.subr.bf16.mxu0 0
        %569 = vmatpush1.bf16.msra.mxu0 0
        %570 = vmatprep.subr.bf16.mxu0 0
        %571 = vmatpush1.bf16.msra.mxu0 0
        %572 = vmatprep.subr.bf16.mxu0 0
        %573 = vmatpush1.bf16.msra.mxu0 0
        %574 = vmatprep.subr.bf16.mxu0 0
        %575 = vmatpush1.bf16.msra.mxu0 0
        %576 = vmatprep.subr.bf16.mxu0 0
        %577 = vmatpush1.bf16.msra.mxu0 0
        %578 = vmatprep.subr.bf16.mxu0 0
        %579 = vmatpush1.bf16.msra.mxu0 0
        %580 = vmatprep.subr.bf16.mxu0 0
        %581 = vmatpush1.bf16.msra.mxu0 0
        %582 = vmatprep.subr.bf16.mxu0 0
        %583 = vmatpush1.bf16.msra.mxu0 0
        %584 = vmatprep.subr.bf16.mxu0 0
        %585 = vmatpush1.bf16.msra.mxu0 0
        %586 = vmatprep.subr.bf16.mxu0 0
        %587 = vmatpush1.bf16.msra.mxu0 0
        %588 = vmatprep.subr.bf16.mxu0 0
        %589 = vmatpush1.bf16.msra.mxu0 0
        %590 = vmatprep.subr.bf16.mxu0 0
        %591 = vmatpush1.bf16.msra.mxu0 0
        %592 = vmatprep.mubr.bf16.mxu0 0
        %593 = vmatmul.mubr.bf16.gmra.mrb[0].mxu0 %v440
        %v594 = vpop.f32.mrb[0].mxu0
        %v595 = vadd.f32 0.0, %v594
        %v596 = vpop.f32.mrb[0].mxu0
        %v597 = vpop.f32.mrb[0].mxu0
        %v598 = vpop.f32.mrb[0].mxu0
        %599 = vdwg.mxu0
        %v600 = vpack.c.bf16 %v595, %v595
        %601 = vst.msk [vmem:[%s388] sm:$0xf] %vm483, %v600
        %s602 = sand.u32 %s185, 1
        %s603 = scalar_lea.sflag [#allocation4], %s602
        %s604 = sand.u32 %s185, 1
        %s605 = smul.addr %s604, 4
        %s606 = scalar_lea.vmem [#allocation8], %s605
        %s607 = sand.u32 %s30, 1
        %s608 = scalar_lea.sflag [#allocation10], %s607
        %s609 = sand.u32 %s213, 1
        %s610 = smul.addr %s609, 4
        %s611 = scalar_lea.vmem [#allocation9], %s610
        %s612 = sand.u32 %s30, 1
        %s613 = scalar_lea.sflag [#allocation10], %s612
        %s614 = sand.u32 %s241, 1
        %s615 = smul.addr %s614, 4
        %s616 = scalar_lea.vmem [#allocation11], %s615
        // Predicated region
        $region57: #{tpu_custom_call.1} parent=43 // pred_check
          %p617 = pneg %p195
        $region58: #{tpu_custom_call.1} parent=43 // pred_check_branch
          %619 = sbr.rel (%p617) target = $region60
        $region59: #{tpu_custom_call.1} parent=43 // pred_region
          %s621 = ssub.s32 64, 64
          %622 = vsyncadd %s603, %s621
          %s623 = sadd.s32 %s35, %s34
          %s624 = smul.addr %s623, 64
          %s625 = scalar_lea.hbm %s6, %s624
          %s627 = sshll.u32 %s606, 4
          %s628 = int_to_ptr.vmem [resolvable:$true] %s627
          %630 = dma.vmem_to_hbm [thread:$0]  %s628, 64, %s625, %s603
        $region60: #{tpu_custom_call.1} parent=43 // pred_fallthru
          _
        // Predicated region
        $region61: #{tpu_custom_call.1} parent=43 // pred_check
          %p631 = pneg %p223
        $region62: #{tpu_custom_call.1} parent=43 // pred_check_branch
          %633 = sbr.rel (%p631) target = $region64
        $region63: #{tpu_custom_call.1} parent=43 // pred_region
          %s635 = ssub.s32 64, 64
          %636 = vsyncadd %s608, %s635
          %s637 = sadd.s32 %s35, %s34
          %s638 = smul.addr %s637, 64
          %s639 = scalar_lea.hbm %s7, %s638
          %s641 = sshll.u32 %s611, 4
          %s642 = int_to_ptr.vmem [resolvable:$true] %s641
          %644 = dma.vmem_to_hbm [thread:$0]  %s642, 64, %s639, %s608
        $region64: #{tpu_custom_call.1} parent=43 // pred_fallthru
          _
        // Predicated region
        $region65: #{tpu_custom_call.1} parent=43 // pred_check
          %p645 = pneg %p251
        $region66: #{tpu_custom_call.1} parent=43 // pred_check_branch
          %647 = sbr.rel (%p645) target = $region68
        $region67: #{tpu_custom_call.1} parent=43 // pred_region
          %s649 = ssub.s32 64, 64
          %650 = vsyncadd %s613, %s649
          %s651 = sadd.s32 %s35, %s34
          %s652 = smul.addr %s651, 64
          %s653 = scalar_lea.hbm %s8, %s652
          %s655 = sshll.u32 %s616, 4
          %s656 = int_to_ptr.vmem [resolvable:$true] %s655
          %658 = dma.vmem_to_hbm [thread:$0]  %s656, 64, %s653, %s613
        $region68: #{tpu_custom_call.1} parent=43 // pred_fallthru
          _
      $region44: #{tpu_custom_call.1} parent=5 // pred_fallthru
        _
      %p659 = scmp.le.s32.totalorder 2, %s25
      // Predicated region
      $region69: #{tpu_custom_call.1} parent=5 // pred_check
        %p660 = pneg %p659
      $region70: #{tpu_custom_call.1} parent=5 // pred_check_branch
        %662 = sbr.rel (%p660) target = $region72
      $region71: #{tpu_custom_call.1} parent=5 // pred_region
        %s663 = ssub.s32 %s25, 2
        // Predicated region
        $region73: #{tpu_custom_call.1} parent=71 // pred_check
          %p664 = pneg %p201
        $region74: #{tpu_custom_call.1} parent=71 // pred_check_branch
          %666 = sbr.rel (%p664) target = $region76
        $region75: #{tpu_custom_call.1} parent=71 // pred_region
          %s667 = sand.u32 %s186, 1
          %s668 = scalar_lea.sflag [#allocation4], %s667
          %s669 = sand.u32 %s186, 1
          %s670 = smul.addr %s669, 4
          %s671 = scalar_lea.vmem [#allocation8], %s670
          %672 = dma.done %s668, 64
        $region76: #{tpu_custom_call.1} parent=71 // pred_fallthru
          _
        // Predicated region
        $region77: #{tpu_custom_call.1} parent=71 // pred_check
          %p673 = pneg %p229
        $region78: #{tpu_custom_call.1} parent=71 // pred_check_branch
          %675 = sbr.rel (%p673) target = $region80
        $region79: #{tpu_custom_call.1} parent=71 // pred_region
          %s676 = sand.u32 %s31, 1
          %s677 = scalar_lea.sflag [#allocation10], %s676
          %s678 = sand.u32 %s214, 1
          %s679 = smul.addr %s678, 4
          %s680 = scalar_lea.vmem [#allocation9], %s679
          %681 = dma.done %s677, 64
        $region80: #{tpu_custom_call.1} parent=71 // pred_fallthru
          _
        // Predicated region
        $region81: #{tpu_custom_call.1} parent=71 // pred_check
          %p682 = pneg %p257
        $region82: #{tpu_custom_call.1} parent=71 // pred_check_branch
          %684 = sbr.rel (%p682) target = $region84
        $region83: #{tpu_custom_call.1} parent=71 // pred_region
          %s685 = sand.u32 %s31, 1
          %s686 = scalar_lea.sflag [#allocation10], %s685
          %s687 = sand.u32 %s242, 1
          %s688 = smul.addr %s687, 4
          %s689 = scalar_lea.vmem [#allocation11], %s688
          %690 = dma.done %s686, 64
        $region84: #{tpu_custom_call.1} parent=71 // pred_fallthru
          _
      $region72: #{tpu_custom_call.1} parent=5 // pred_fallthru
        _
    $region6: #{tpu_custom_call.1} parent=1 // loop_footer
      %s29 = sadd.s32 1, %s25
    $region7: #{tpu_custom_call.1} parent=1 // loop_footer_branch
      %24 = sbr.rel target = $region3
    $region8: #{tpu_custom_call.1} parent=1 // loop_exit
      _
    %691 = vsyncpa [#allocation3], 1
    %s692 = scalar_lea.sflag [#allocation3], 1
    %693 = vsyncpa %s692, 1
    %694 = vsyncpa [#allocation6], 1
    %695 = vsyncpa [#allocation4], 1
    %s696 = scalar_lea.sflag [#allocation4], 1
    %697 = vsyncpa %s696, 1
    %698 = vsyncpa [#allocation10], 1
    %s699 = scalar_lea.sflag [#allocation10], 1
    %700 = vsyncpa %s699, 1

</llo_original>
